<compile_context>
chip_gen: v7x
topology: tpu7x:2x2x1
jax: 0.10.0
libtpu: 0.0.40
codegen_flags: <defaults>
</compile_context>

<pallas_src>
import functools

import jax
import jax.numpy as jnp
from jax.experimental import pallas as pl
from jax.experimental.pallas import tpu as pltpu


def _round_up(x, m):
    return (x + m - 1) // m * m


# ---------------- fused LSTM (full sequence, in-kernel time loop) + FC --------
def _lstm_fc_kernel(x_ref, wih_ref, whh_ref, b_ref, fcw_ref, fcb_ref,
                    y_ref, h_all_ref, *, seq_len, batch_pad, hidden):
    S, Bp, H = seq_len, batch_pad, hidden

    # Input projection for ALL timesteps at once (single large MXU matmul);
    # bias broadcast happens once, outside the recurrence.
    xproj = (jnp.dot(x_ref[...], wih_ref[...],
                     preferred_element_type=jnp.float32) + b_ref[...])   # (S*Bp, 4H)
    w_hh = whh_ref[...]                                                   # (H, 4H)

    h = jnp.zeros((Bp, H), jnp.float32)
    c = jnp.zeros((Bp, H), jnp.float32)

    # Serial recurrence: only h @ W_hh + pointwise gates on the critical path.
    for t in range(S):                     # static trip count, fully unrolled
        gates = xproj[t * Bp:(t + 1) * Bp, :] + jnp.dot(
            h, w_hh, preferred_element_type=jnp.float32)                  # (Bp, 4H)
        ifo = jax.nn.sigmoid(gates[:, :3 * H])      # one contiguous 3H slice
        g = jnp.tanh(gates[:, 3 * H:])              # one contiguous  H slice
        c = ifo[:, H:2 * H] * c + ifo[:, :H] * g
        h = ifo[:, 2 * H:3 * H] * jnp.tanh(c)
        h_all_ref[t * Bp:(t + 1) * Bp, :] = h

    # Final Linear over all timesteps: one lane-dense matmul + unmasked store.
    y_ref[...] = (jnp.dot(h_all_ref[...], fcw_ref[...],
                          preferred_element_type=jnp.float32) + fcb_ref[...])


def lstm_fc(x2d, w_ih_t, w_hh_t, b, fc_w_t, fc_b, *, seq_len, batch_pad):
    """x2d: (S*Bp, Ein) time-major rows -> (S*Bp, Vp) padded logits."""
    NB, Ein = x2d.shape
    H = w_hh_t.shape[0]
    Vp = fc_w_t.shape[1]
    kernel = functools.partial(_lstm_fc_kernel, seq_len=seq_len,
                               batch_pad=batch_pad, hidden=H)
    return pl.pallas_call(
        kernel,
        out_shape=jax.ShapeDtypeStruct((NB, Vp), jnp.float32),
        in_specs=[pl.BlockSpec((NB, Ein), lambda: (0, 0)),
                  pl.BlockSpec((Ein, 4 * H), lambda: (0, 0)),
                  pl.BlockSpec((H, 4 * H), lambda: (0, 0)),
                  pl.BlockSpec((1, 4 * H), lambda: (0, 0)),
                  pl.BlockSpec((H, Vp), lambda: (0, 0)),
                  pl.BlockSpec((1, Vp), lambda: (0, 0))],
        out_specs=pl.BlockSpec((NB, Vp), lambda: (0, 0)),
        scratch_shapes=[pltpu.VMEM((NB, H), jnp.float32)],   # all h_t, time-major
    )(x2d, w_ih_t, w_hh_t, b, fc_w_t, fc_b)


# ---------------- plain LSTM layer (used only for num_layers > 1) -------------
def _lstm_seq_kernel(x_ref, wih_ref, whh_ref, b_ref, out_ref,
                     *, seq_len, batch_pad, hidden):
    S, Bp, H = seq_len, batch_pad, hidden
    xproj = (jnp.dot(x_ref[...], wih_ref[...],
                     preferred_element_type=jnp.float32) + b_ref[...])
    w_hh = whh_ref[...]
    h = jnp.zeros((Bp, H), jnp.float32)
    c = jnp.zeros((Bp, H), jnp.float32)
    for t in range(S):
        gates = xproj[t * Bp:(t + 1) * Bp, :] + jnp.dot(
            h, w_hh, preferred_element_type=jnp.float32)
        ifo = jax.nn.sigmoid(gates[:, :3 * H])
        g = jnp.tanh(gates[:, 3 * H:])
        c = ifo[:, H:2 * H] * c + ifo[:, :H] * g
        h = ifo[:, 2 * H:3 * H] * jnp.tanh(c)
        out_ref[t * Bp:(t + 1) * Bp, :] = h


def lstm_seq(x2d, w_ih_t, w_hh_t, b, *, seq_len, batch_pad):
    """x2d: (S*Bp, Ein) time-major rows -> (S*Bp, H) hidden states."""
    NB, Ein = x2d.shape
    H = w_hh_t.shape[0]
    kernel = functools.partial(_lstm_seq_kernel, seq_len=seq_len,
                               batch_pad=batch_pad, hidden=H)
    return pl.pallas_call(
        kernel,
        out_shape=jax.ShapeDtypeStruct((NB, H), jnp.float32),
        in_specs=[pl.BlockSpec((NB, Ein), lambda: (0, 0)),
                  pl.BlockSpec((Ein, 4 * H), lambda: (0, 0)),
                  pl.BlockSpec((H, 4 * H), lambda: (0, 0)),
                  pl.BlockSpec((1, 4 * H), lambda: (0, 0))],
        out_specs=pl.BlockSpec((NB, H), lambda: (0, 0)),
    )(x2d, w_ih_t, w_hh_t, b)


# ----------------------------------- Seq2Seq ----------------------------------
class Seq2SeqPallas:
    """Embedding -> stacked unidirectional LSTM -> Linear (PyTorch Seq2Seq)."""

    def __init__(self, key, input_size, embedding_size, hidden_size,
                 num_layers=1, bias=True, bidirectional=False):
        # TODO(synk): bidirectional (reverse-time) LSTM pass not implemented.
        assert not bidirectional, "only bidirectional=False is supported"
        self.input_size = input_size
        self.embedding_size = embedding_size
        self.hidden_size = hidden_size
        self.num_layers = num_layers
        self.vocab_pad = _round_up(input_size, 128)   # lane-dense FC output

        keys = jax.random.split(key, 2 + 4 * num_layers + 2)
        k = 1.0 / jnp.sqrt(hidden_size)

        # nn.Embedding(input_size, embedding_size): weight ~ N(0, 1)
        self.embedding = jax.random.normal(
            keys[0], (input_size, embedding_size), jnp.float32)

        # nn.LSTM weights per layer, stored pre-transposed for the kernel with
        # gate columns regrouped as [i, f, o, g]:
        #   w_ih_t: (in_dim, 4H), w_hh_t: (H, 4H), bias: (1, 4H) = b_ih + b_hh
        self.layers = []
        for layer in range(num_layers):
            in_dim = embedding_size if layer == 0 else hidden_size
            kw1, kw2, kb1, kb2 = keys[1 + 4 * layer:1 + 4 * layer + 4]
            w_ih_t = jax.random.uniform(kw1, (in_dim, 4 * hidden_size),
                                        jnp.float32, -k, k)
            w_hh_t = jax.random.uniform(kw2, (hidden_size, 4 * hidden_size),
                                        jnp.float32, -k, k)
            if bias:
                b = (jax.random.uniform(kb1, (1, 4 * hidden_size),
                                        jnp.float32, -k, k)
                     + jax.random.uniform(kb2, (1, 4 * hidden_size),
                                          jnp.float32, -k, k))
            else:
                b = jnp.zeros((1, 4 * hidden_size), jnp.float32)
            self.layers.append((w_ih_t, w_hh_t, b))

        # nn.Linear(hidden_size, input_size), zero-padded to a 128-lane vocab.
        kf_w, kf_b = keys[-2], keys[-1]
        fc_w_t = jax.random.uniform(
            kf_w, (hidden_size, input_size), jnp.float32, -k, k)
        fc_b = jax.random.uniform(kf_b, (1, input_size), jnp.float32, -k, k)
        pad_v = self.vocab_pad - input_size
        self.fc_w_t = jnp.pad(fc_w_t, ((0, 0), (0, pad_v)))
        self.fc_b = jnp.pad(fc_b, ((0, 0), (0, pad_v)))

    def __call__(self, x):
        """x: (B, S) int32 token ids -> y_pred: (B, S, input_size) float32."""
        B, S = x.shape
        Bp = _round_up(B, 8)                      # f32 sublane granularity

        # Embedding gather directly into time-major layout, then pad batch.
        emb = jnp.take(self.embedding, x.T, axis=0)        # (S, B, E)
        emb = jnp.pad(emb, ((0, 0), (0, Bp - B), (0, 0)))  # (S, Bp, E)
        h2d = emb.reshape(S * Bp, self.embedding_size)     # time-major rows

        # All layers but the last: plain full-sequence LSTM kernels.
        for (w_ih_t, w_hh_t, b) in self.layers[:-1]:
            h2d = lstm_seq(h2d, w_ih_t, w_hh_t, b, seq_len=S, batch_pad=Bp)

        # Last LSTM layer fused with the Linear head in one kernel.
        w_ih_t, w_hh_t, b = self.layers[-1]
        y2d = lstm_fc(h2d, w_ih_t, w_hh_t, b, self.fc_w_t, self.fc_b,
                      seq_len=S, batch_pad=Bp)             # (S*Bp, Vp)

        y = y2d.reshape(S, Bp, self.vocab_pad)[:, :B, :self.input_size]
        return jnp.transpose(y, (1, 0, 2))                 # (B, S, V) batch-first


# ------------------------------------ main -------------------------------------
if __name__ == "__main__":
    key = jax.random.PRNGKey(0)
    k_params, k_data = jax.random.split(key)

    # args: hidden_size=32, embedding_size=32, num_layers=1, bias=True,
    #       bidirectional=False
    VOCAB, EMB, HID, LAYERS = 50, 32, 32, 1
    BATCH, SEQ = 2, 8

    model = Seq2SeqPallas(k_params, input_size=VOCAB, embedding_size=EMB,
                          hidden_size=HID, num_layers=LAYERS,
                          bias=True, bidirectional=False)

    x = jax.random.randint(k_data, (BATCH, SEQ), 0, VOCAB, dtype=jnp.int32)

    y_pred = model(x)
    y_pred = jax.block_until_ready(y_pred)

    assert y_pred.shape == (BATCH, SEQ, VOCAB), y_pred.shape
    assert y_pred.dtype == jnp.float32
    assert bool(jnp.all(jnp.isfinite(y_pred)))
    print("KERNEL_OK")
</pallas_src>

<mosaic_0001>
module attributes {stable_mosaic.version = 11 : i64} {
  func.func @_lstm_fc_kernel(%arg0: memref<64x32xf32, #tpu.memory_space<vmem>>, %arg1: memref<32x128xf32, #tpu.memory_space<vmem>>, %arg2: memref<32x128xf32, #tpu.memory_space<vmem>>, %arg3: memref<1x128xf32, #tpu.memory_space<vmem>>, %arg4: memref<32x128xf32, #tpu.memory_space<vmem>>, %arg5: memref<1x128xf32, #tpu.memory_space<vmem>>, %arg6: memref<64x128xf32, #tpu.memory_space<vmem>>, %arg7: memref<64x32xf32, #tpu.memory_space<vmem>>) attributes {dimension_semantics = [], scalar_prefetch = 0 : i64, scratch_operands = 1 : i64, tpu.core_type = #tpu.core_type<tc>} {
    %c0 = arith.constant 0 : index
    %c0_0 = arith.constant 0 : index
    %0 = vector.load %arg0[%c0, %c0_0] : memref<64x32xf32, #tpu.memory_space<vmem>>, vector<64x32xf32>
    %c0_1 = arith.constant 0 : index
    %c0_2 = arith.constant 0 : index
    %1 = vector.load %arg1[%c0_1, %c0_2] : memref<32x128xf32, #tpu.memory_space<vmem>>, vector<32x128xf32>
    %cst = arith.constant dense<0.000000e+00> : vector<64x128xf32>
    %2 = tpu.matmul %0, %1, %cst {dimension_numbers = #tpu.dot_dimension_numbers<[1], [0], [0], [1], [0, 0, 1, 1], [], []>} : vector<64x32xf32>, vector<32x128xf32>, vector<64x128xf32> -> vector<64x128xf32>
    %c0_3 = arith.constant 0 : index
    %c0_4 = arith.constant 0 : index
    %3 = vector.load %arg3[%c0_3, %c0_4] : memref<1x128xf32, #tpu.memory_space<vmem>>, vector<1x128xf32>
    %4 = vector.broadcast %3 : vector<1x128xf32> to vector<64x128xf32>
    %5 = arith.addf %2, %4 : vector<64x128xf32>
    %c0_5 = arith.constant 0 : index
    %c0_6 = arith.constant 0 : index
    %6 = vector.load %arg2[%c0_5, %c0_6] : memref<32x128xf32, #tpu.memory_space<vmem>>, vector<32x128xf32>
    %cst_7 = arith.constant 0.000000e+00 : f32
    %7 = vector.broadcast %cst_7 : f32 to vector<8x32xf32>
    %cst_8 = arith.constant 0.000000e+00 : f32
    %8 = vector.broadcast %cst_8 : f32 to vector<8x32xf32>
    %9 = vector.extract_strided_slice %5 {offsets = [0, 0], sizes = [8, 128], strides = [1, 1]} : vector<64x128xf32> to vector<8x128xf32>
    %cst_9 = arith.constant dense<0.000000e+00> : vector<8x128xf32>
    %10 = tpu.matmul %7, %6, %cst_9 {dimension_numbers = #tpu.dot_dimension_numbers<[1], [0], [0], [1], [0, 0, 1, 1], [], []>} : vector<8x32xf32>, vector<32x128xf32>, vector<8x128xf32> -> vector<8x128xf32>
    %11 = arith.addf %9, %10 : vector<8x128xf32>
    %12 = vector.extract_strided_slice %11 {offsets = [0, 0], sizes = [8, 96], strides = [1, 1]} : vector<8x128xf32> to vector<8x96xf32>
    %13 = arith.negf %12 : vector<8x96xf32>
    %14 = math.exp %13 : vector<8x96xf32>
    %cst_10 = arith.constant 1.000000e+00 : f32
    %15 = vector.broadcast %cst_10 : f32 to vector<8x96xf32>
    %16 = arith.addf %15, %14 : vector<8x96xf32>
    %17 = arith.divf %15, %16 : vector<8x96xf32>
    %18 = vector.extract_strided_slice %11 {offsets = [0, 96], sizes = [8, 32], strides = [1, 1]} : vector<8x128xf32> to vector<8x32xf32>
    %19 = math.tanh %18 : vector<8x32xf32>
    %20 = vector.extract_strided_slice %17 {offsets = [0, 32], sizes = [8, 32], strides = [1, 1]} : vector<8x96xf32> to vector<8x32xf32>
    %21 = arith.mulf %20, %8 : vector<8x32xf32>
    %22 = vector.extract_strided_slice %17 {offsets = [0, 0], sizes = [8, 32], strides = [1, 1]} : vector<8x96xf32> to vector<8x32xf32>
    %23 = arith.mulf %22, %19 : vector<8x32xf32>
    %24 = arith.addf %21, %23 : vector<8x32xf32>
    %25 = vector.extract_strided_slice %17 {offsets = [0, 64], sizes = [8, 32], strides = [1, 1]} : vector<8x96xf32> to vector<8x32xf32>
    %26 = math.tanh %24 : vector<8x32xf32>
    %27 = arith.mulf %25, %26 : vector<8x32xf32>
    %c0_11 = arith.constant 0 : index
    %c0_12 = arith.constant 0 : index
    %28 = vector.load %arg7[%c0_11, %c0_12] : memref<64x32xf32, #tpu.memory_space<vmem>>, vector<8x32xf32>
    tpu.vector_store %arg7[%c0_11, %c0_12], %27 {strides = array<i32>} : memref<64x32xf32, #tpu.memory_space<vmem>>, vector<8x32xf32>,
    %29 = vector.extract_strided_slice %5 {offsets = [8, 0], sizes = [8, 128], strides = [1, 1]} : vector<64x128xf32> to vector<8x128xf32>
    %cst_13 = arith.constant dense<0.000000e+00> : vector<8x128xf32>
    %30 = tpu.matmul %27, %6, %cst_13 {dimension_numbers = #tpu.dot_dimension_numbers<[1], [0], [0], [1], [0, 0, 1, 1], [], []>} : vector<8x32xf32>, vector<32x128xf32>, vector<8x128xf32> -> vector<8x128xf32>
    %31 = arith.addf %29, %30 : vector<8x128xf32>
    %32 = vector.extract_strided_slice %31 {offsets = [0, 0], sizes = [8, 96], strides = [1, 1]} : vector<8x128xf32> to vector<8x96xf32>
    %33 = arith.negf %32 : vector<8x96xf32>
    %34 = math.exp %33 : vector<8x96xf32>
    %cst_14 = arith.constant 1.000000e+00 : f32
    %35 = vector.broadcast %cst_14 : f32 to vector<8x96xf32>
    %36 = arith.addf %35, %34 : vector<8x96xf32>
    %37 = arith.divf %35, %36 : vector<8x96xf32>
    %38 = vector.extract_strided_slice %31 {offsets = [0, 96], sizes = [8, 32], strides = [1, 1]} : vector<8x128xf32> to vector<8x32xf32>
    %39 = math.tanh %38 : vector<8x32xf32>
    %40 = vector.extract_strided_slice %37 {offsets = [0, 32], sizes = [8, 32], strides = [1, 1]} : vector<8x96xf32> to vector<8x32xf32>
    %41 = arith.mulf %40, %24 : vector<8x32xf32>
    %42 = vector.extract_strided_slice %37 {offsets = [0, 0], sizes = [8, 32], strides = [1, 1]} : vector<8x96xf32> to vector<8x32xf32>
    %43 = arith.mulf %42, %39 : vector<8x32xf32>
    %44 = arith.addf %41, %43 : vector<8x32xf32>
    %45 = vector.extract_strided_slice %37 {offsets = [0, 64], sizes = [8, 32], strides = [1, 1]} : vector<8x96xf32> to vector<8x32xf32>
    %46 = math.tanh %44 : vector<8x32xf32>
    %47 = arith.mulf %45, %46 : vector<8x32xf32>
    %c8 = arith.constant 8 : index
    %c0_15 = arith.constant 0 : index
    %48 = vector.load %arg7[%c8, %c0_15] : memref<64x32xf32, #tpu.memory_space<vmem>>, vector<8x32xf32>
    tpu.vector_store %arg7[%c8, %c0_15], %47 {strides = array<i32>} : memref<64x32xf32, #tpu.memory_space<vmem>>, vector<8x32xf32>,
    %49 = vector.extract_strided_slice %5 {offsets = [16, 0], sizes = [8, 128], strides = [1, 1]} : vector<64x128xf32> to vector<8x128xf32>
    %cst_16 = arith.constant dense<0.000000e+00> : vector<8x128xf32>
    %50 = tpu.matmul %47, %6, %cst_16 {dimension_numbers = #tpu.dot_dimension_numbers<[1], [0], [0], [1], [0, 0, 1, 1], [], []>} : vector<8x32xf32>, vector<32x128xf32>, vector<8x128xf32> -> vector<8x128xf32>
    %51 = arith.addf %49, %50 : vector<8x128xf32>
    %52 = vector.extract_strided_slice %51 {offsets = [0, 0], sizes = [8, 96], strides = [1, 1]} : vector<8x128xf32> to vector<8x96xf32>
    %53 = arith.negf %52 : vector<8x96xf32>
    %54 = math.exp %53 : vector<8x96xf32>
    %cst_17 = arith.constant 1.000000e+00 : f32
    %55 = vector.broadcast %cst_17 : f32 to vector<8x96xf32>
    %56 = arith.addf %55, %54 : vector<8x96xf32>
    %57 = arith.divf %55, %56 : vector<8x96xf32>
    %58 = vector.extract_strided_slice %51 {offsets = [0, 96], sizes = [8, 32], strides = [1, 1]} : vector<8x128xf32> to vector<8x32xf32>
    %59 = math.tanh %58 : vector<8x32xf32>
    %60 = vector.extract_strided_slice %57 {offsets = [0, 32], sizes = [8, 32], strides = [1, 1]} : vector<8x96xf32> to vector<8x32xf32>
    %61 = arith.mulf %60, %44 : vector<8x32xf32>
    %62 = vector.extract_strided_slice %57 {offsets = [0, 0], sizes = [8, 32], strides = [1, 1]} : vector<8x96xf32> to vector<8x32xf32>
    %63 = arith.mulf %62, %59 : vector<8x32xf32>
    %64 = arith.addf %61, %63 : vector<8x32xf32>
    %65 = vector.extract_strided_slice %57 {offsets = [0, 64], sizes = [8, 32], strides = [1, 1]} : vector<8x96xf32> to vector<8x32xf32>
    %66 = math.tanh %64 : vector<8x32xf32>
    %67 = arith.mulf %65, %66 : vector<8x32xf32>
    %c16 = arith.constant 16 : index
    %c0_18 = arith.constant 0 : index
    %68 = vector.load %arg7[%c16, %c0_18] : memref<64x32xf32, #tpu.memory_space<vmem>>, vector<8x32xf32>
    tpu.vector_store %arg7[%c16, %c0_18], %67 {strides = array<i32>} : memref<64x32xf32, #tpu.memory_space<vmem>>, vector<8x32xf32>,
    %69 = vector.extract_strided_slice %5 {offsets = [24, 0], sizes = [8, 128], strides = [1, 1]} : vector<64x128xf32> to vector<8x128xf32>
    %cst_19 = arith.constant dense<0.000000e+00> : vector<8x128xf32>
    %70 = tpu.matmul %67, %6, %cst_19 {dimension_numbers = #tpu.dot_dimension_numbers<[1], [0], [0], [1], [0, 0, 1, 1], [], []>} : vector<8x32xf32>, vector<32x128xf32>, vector<8x128xf32> -> vector<8x128xf32>
    %71 = arith.addf %69, %70 : vector<8x128xf32>
    %72 = vector.extract_strided_slice %71 {offsets = [0, 0], sizes = [8, 96], strides = [1, 1]} : vector<8x128xf32> to vector<8x96xf32>
    %73 = arith.negf %72 : vector<8x96xf32>
    %74 = math.exp %73 : vector<8x96xf32>
    %cst_20 = arith.constant 1.000000e+00 : f32
    %75 = vector.broadcast %cst_20 : f32 to vector<8x96xf32>
    %76 = arith.addf %75, %74 : vector<8x96xf32>
    %77 = arith.divf %75, %76 : vector<8x96xf32>
    %78 = vector.extract_strided_slice %71 {offsets = [0, 96], sizes = [8, 32], strides = [1, 1]} : vector<8x128xf32> to vector<8x32xf32>
    %79 = math.tanh %78 : vector<8x32xf32>
    %80 = vector.extract_strided_slice %77 {offsets = [0, 32], sizes = [8, 32], strides = [1, 1]} : vector<8x96xf32> to vector<8x32xf32>
    %81 = arith.mulf %80, %64 : vector<8x32xf32>
    %82 = vector.extract_strided_slice %77 {offsets = [0, 0], sizes = [8, 32], strides = [1, 1]} : vector<8x96xf32> to vector<8x32xf32>
    %83 = arith.mulf %82, %79 : vector<8x32xf32>
    %84 = arith.addf %81, %83 : vector<8x32xf32>
    %85 = vector.extract_strided_slice %77 {offsets = [0, 64], sizes = [8, 32], strides = [1, 1]} : vector<8x96xf32> to vector<8x32xf32>
    %86 = math.tanh %84 : vector<8x32xf32>
    %87 = arith.mulf %85, %86 : vector<8x32xf32>
    %c24 = arith.constant 24 : index
    %c0_21 = arith.constant 0 : index
    %88 = vector.load %arg7[%c24, %c0_21] : memref<64x32xf32, #tpu.memory_space<vmem>>, vector<8x32xf32>
    tpu.vector_store %arg7[%c24, %c0_21], %87 {strides = array<i32>} : memref<64x32xf32, #tpu.memory_space<vmem>>, vector<8x32xf32>,
    %89 = vector.extract_strided_slice %5 {offsets = [32, 0], sizes = [8, 128], strides = [1, 1]} : vector<64x128xf32> to vector<8x128xf32>
    %cst_22 = arith.constant dense<0.000000e+00> : vector<8x128xf32>
    %90 = tpu.matmul %87, %6, %cst_22 {dimension_numbers = #tpu.dot_dimension_numbers<[1], [0], [0], [1], [0, 0, 1, 1], [], []>} : vector<8x32xf32>, vector<32x128xf32>, vector<8x128xf32> -> vector<8x128xf32>
    %91 = arith.addf %89, %90 : vector<8x128xf32>
    %92 = vector.extract_strided_slice %91 {offsets = [0, 0], sizes = [8, 96], strides = [1, 1]} : vector<8x128xf32> to vector<8x96xf32>
    %93 = arith.negf %92 : vector<8x96xf32>
    %94 = math.exp %93 : vector<8x96xf32>
    %cst_23 = arith.constant 1.000000e+00 : f32
    %95 = vector.broadcast %cst_23 : f32 to vector<8x96xf32>
    %96 = arith.addf %95, %94 : vector<8x96xf32>
    %97 = arith.divf %95, %96 : vector<8x96xf32>
    %98 = vector.extract_strided_slice %91 {offsets = [0, 96], sizes = [8, 32], strides = [1, 1]} : vector<8x128xf32> to vector<8x32xf32>
    %99 = math.tanh %98 : vector<8x32xf32>
    %100 = vector.extract_strided_slice %97 {offsets = [0, 32], sizes = [8, 32], strides = [1, 1]} : vector<8x96xf32> to vector<8x32xf32>
    %101 = arith.mulf %100, %84 : vector<8x32xf32>
    %102 = vector.extract_strided_slice %97 {offsets = [0, 0], sizes = [8, 32], strides = [1, 1]} : vector<8x96xf32> to vector<8x32xf32>
    %103 = arith.mulf %102, %99 : vector<8x32xf32>
    %104 = arith.addf %101, %103 : vector<8x32xf32>
    %105 = vector.extract_strided_slice %97 {offsets = [0, 64], sizes = [8, 32], strides = [1, 1]} : vector<8x96xf32> to vector<8x32xf32>
    %106 = math.tanh %104 : vector<8x32xf32>
    %107 = arith.mulf %105, %106 : vector<8x32xf32>
    %c32 = arith.constant 32 : index
    %c0_24 = arith.constant 0 : index
    %108 = vector.load %arg7[%c32, %c0_24] : memref<64x32xf32, #tpu.memory_space<vmem>>, vector<8x32xf32>
    tpu.vector_store %arg7[%c32, %c0_24], %107 {strides = array<i32>} : memref<64x32xf32, #tpu.memory_space<vmem>>, vector<8x32xf32>,
    %109 = vector.extract_strided_slice %5 {offsets = [40, 0], sizes = [8, 128], strides = [1, 1]} : vector<64x128xf32> to vector<8x128xf32>
    %cst_25 = arith.constant dense<0.000000e+00> : vector<8x128xf32>
    %110 = tpu.matmul %107, %6, %cst_25 {dimension_numbers = #tpu.dot_dimension_numbers<[1], [0], [0], [1], [0, 0, 1, 1], [], []>} : vector<8x32xf32>, vector<32x128xf32>, vector<8x128xf32> -> vector<8x128xf32>
    %111 = arith.addf %109, %110 : vector<8x128xf32>
    %112 = vector.extract_strided_slice %111 {offsets = [0, 0], sizes = [8, 96], strides = [1, 1]} : vector<8x128xf32> to vector<8x96xf32>
    %113 = arith.negf %112 : vector<8x96xf32>
    %114 = math.exp %113 : vector<8x96xf32>
    %cst_26 = arith.constant 1.000000e+00 : f32
    %115 = vector.broadcast %cst_26 : f32 to vector<8x96xf32>
    %116 = arith.addf %115, %114 : vector<8x96xf32>
    %117 = arith.divf %115, %116 : vector<8x96xf32>
    %118 = vector.extract_strided_slice %111 {offsets = [0, 96], sizes = [8, 32], strides = [1, 1]} : vector<8x128xf32> to vector<8x32xf32>
    %119 = math.tanh %118 : vector<8x32xf32>
    %120 = vector.extract_strided_slice %117 {offsets = [0, 32], sizes = [8, 32], strides = [1, 1]} : vector<8x96xf32> to vector<8x32xf32>
    %121 = arith.mulf %120, %104 : vector<8x32xf32>
    %122 = vector.extract_strided_slice %117 {offsets = [0, 0], sizes = [8, 32], strides = [1, 1]} : vector<8x96xf32> to vector<8x32xf32>
    %123 = arith.mulf %122, %119 : vector<8x32xf32>
    %124 = arith.addf %121, %123 : vector<8x32xf32>
    %125 = vector.extract_strided_slice %117 {offsets = [0, 64], sizes = [8, 32], strides = [1, 1]} : vector<8x96xf32> to vector<8x32xf32>
    %126 = math.tanh %124 : vector<8x32xf32>
    %127 = arith.mulf %125, %126 : vector<8x32xf32>
    %c40 = arith.constant 40 : index
    %c0_27 = arith.constant 0 : index
    %128 = vector.load %arg7[%c40, %c0_27] : memref<64x32xf32, #tpu.memory_space<vmem>>, vector<8x32xf32>
    tpu.vector_store %arg7[%c40, %c0_27], %127 {strides = array<i32>} : memref<64x32xf32, #tpu.memory_space<vmem>>, vector<8x32xf32>,
    %129 = vector.extract_strided_slice %5 {offsets = [48, 0], sizes = [8, 128], strides = [1, 1]} : vector<64x128xf32> to vector<8x128xf32>
    %cst_28 = arith.constant dense<0.000000e+00> : vector<8x128xf32>
    %130 = tpu.matmul %127, %6, %cst_28 {dimension_numbers = #tpu.dot_dimension_numbers<[1], [0], [0], [1], [0, 0, 1, 1], [], []>} : vector<8x32xf32>, vector<32x128xf32>, vector<8x128xf32> -> vector<8x128xf32>
    %131 = arith.addf %129, %130 : vector<8x128xf32>
    %132 = vector.extract_strided_slice %131 {offsets = [0, 0], sizes = [8, 96], strides = [1, 1]} : vector<8x128xf32> to vector<8x96xf32>
    %133 = arith.negf %132 : vector<8x96xf32>
    %134 = math.exp %133 : vector<8x96xf32>
    %cst_29 = arith.constant 1.000000e+00 : f32
    %135 = vector.broadcast %cst_29 : f32 to vector<8x96xf32>
    %136 = arith.addf %135, %134 : vector<8x96xf32>
    %137 = arith.divf %135, %136 : vector<8x96xf32>
    %138 = vector.extract_strided_slice %131 {offsets = [0, 96], sizes = [8, 32], strides = [1, 1]} : vector<8x128xf32> to vector<8x32xf32>
    %139 = math.tanh %138 : vector<8x32xf32>
    %140 = vector.extract_strided_slice %137 {offsets = [0, 32], sizes = [8, 32], strides = [1, 1]} : vector<8x96xf32> to vector<8x32xf32>
    %141 = arith.mulf %140, %124 : vector<8x32xf32>
    %142 = vector.extract_strided_slice %137 {offsets = [0, 0], sizes = [8, 32], strides = [1, 1]} : vector<8x96xf32> to vector<8x32xf32>
    %143 = arith.mulf %142, %139 : vector<8x32xf32>
    %144 = arith.addf %141, %143 : vector<8x32xf32>
    %145 = vector.extract_strided_slice %137 {offsets = [0, 64], sizes = [8, 32], strides = [1, 1]} : vector<8x96xf32> to vector<8x32xf32>
    %146 = math.tanh %144 : vector<8x32xf32>
    %147 = arith.mulf %145, %146 : vector<8x32xf32>
    %c48 = arith.constant 48 : index
    %c0_30 = arith.constant 0 : index
    %148 = vector.load %arg7[%c48, %c0_30] : memref<64x32xf32, #tpu.memory_space<vmem>>, vector<8x32xf32>
    tpu.vector_store %arg7[%c48, %c0_30], %147 {strides = array<i32>} : memref<64x32xf32, #tpu.memory_space<vmem>>, vector<8x32xf32>,
    %149 = vector.extract_strided_slice %5 {offsets = [56, 0], sizes = [8, 128], strides = [1, 1]} : vector<64x128xf32> to vector<8x128xf32>
    %cst_31 = arith.constant dense<0.000000e+00> : vector<8x128xf32>
    %150 = tpu.matmul %147, %6, %cst_31 {dimension_numbers = #tpu.dot_dimension_numbers<[1], [0], [0], [1], [0, 0, 1, 1], [], []>} : vector<8x32xf32>, vector<32x128xf32>, vector<8x128xf32> -> vector<8x128xf32>
    %151 = arith.addf %149, %150 : vector<8x128xf32>
    %152 = vector.extract_strided_slice %151 {offsets = [0, 0], sizes = [8, 96], strides = [1, 1]} : vector<8x128xf32> to vector<8x96xf32>
    %153 = arith.negf %152 : vector<8x96xf32>
    %154 = math.exp %153 : vector<8x96xf32>
    %cst_32 = arith.constant 1.000000e+00 : f32
    %155 = vector.broadcast %cst_32 : f32 to vector<8x96xf32>
    %156 = arith.addf %155, %154 : vector<8x96xf32>
    %157 = arith.divf %155, %156 : vector<8x96xf32>
    %158 = vector.extract_strided_slice %151 {offsets = [0, 96], sizes = [8, 32], strides = [1, 1]} : vector<8x128xf32> to vector<8x32xf32>
    %159 = math.tanh %158 : vector<8x32xf32>
    %160 = vector.extract_strided_slice %157 {offsets = [0, 32], sizes = [8, 32], strides = [1, 1]} : vector<8x96xf32> to vector<8x32xf32>
    %161 = arith.mulf %160, %144 : vector<8x32xf32>
    %162 = vector.extract_strided_slice %157 {offsets = [0, 0], sizes = [8, 32], strides = [1, 1]} : vector<8x96xf32> to vector<8x32xf32>
    %163 = arith.mulf %162, %159 : vector<8x32xf32>
    %164 = arith.addf %161, %163 : vector<8x32xf32>
    %165 = vector.extract_strided_slice %157 {offsets = [0, 64], sizes = [8, 32], strides = [1, 1]} : vector<8x96xf32> to vector<8x32xf32>
    %166 = math.tanh %164 : vector<8x32xf32>
    %167 = arith.mulf %165, %166 : vector<8x32xf32>
    %c56 = arith.constant 56 : index
    %c0_33 = arith.constant 0 : index
    %168 = vector.load %arg7[%c56, %c0_33] : memref<64x32xf32, #tpu.memory_space<vmem>>, vector<8x32xf32>
    tpu.vector_store %arg7[%c56, %c0_33], %167 {strides = array<i32>} : memref<64x32xf32, #tpu.memory_space<vmem>>, vector<8x32xf32>,
    %c0_34 = arith.constant 0 : index
    %c0_35 = arith.constant 0 : index
    %169 = vector.load %arg7[%c0_34, %c0_35] : memref<64x32xf32, #tpu.memory_space<vmem>>, vector<64x32xf32>
    %c0_36 = arith.constant 0 : index
    %c0_37 = arith.constant 0 : index
    %170 = vector.load %arg4[%c0_36, %c0_37] : memref<32x128xf32, #tpu.memory_space<vmem>>, vector<32x128xf32>
    %cst_38 = arith.constant dense<0.000000e+00> : vector<64x128xf32>
    %171 = tpu.matmul %169, %170, %cst_38 {dimension_numbers = #tpu.dot_dimension_numbers<[1], [0], [0], [1], [0, 0, 1, 1], [], []>} : vector<64x32xf32>, vector<32x128xf32>, vector<64x128xf32> -> vector<64x128xf32>
    %c0_39 = arith.constant 0 : index
    %c0_40 = arith.constant 0 : index
    %172 = vector.load %arg5[%c0_39, %c0_40] : memref<1x128xf32, #tpu.memory_space<vmem>>, vector<1x128xf32>
    %173 = vector.broadcast %172 : vector<1x128xf32> to vector<64x128xf32>
    %174 = arith.addf %171, %173 : vector<64x128xf32>
    %c0_41 = arith.constant 0 : index
    %c0_42 = arith.constant 0 : index
    %175 = vector.load %arg6[%c0_41, %c0_42] : memref<64x128xf32, #tpu.memory_space<vmem>>, vector<64x128xf32>
    tpu.vector_store %arg6[%c0_41, %c0_42], %174 {strides = array<i32>} : memref<64x128xf32, #tpu.memory_space<vmem>>, vector<64x128xf32>,
    return
  }
}

</mosaic_0001>

<llo_original>
// kernel: tpu_custom_call.1
$region0: #{tpu_custom_call.1}
  #allocation0 [shape = 'u32[]', space=smem, size = 0x4, offset = 0x4, fixed_abs, tag = 'smem constant byte address 0x4 - core index']
  #allocation1 [shape = 'u32[144,128]{1,0:T(1,128)}', space=vmem, size = 0x12000, scoped, tag = 'internal scratch']
  #allocation2 [shape = 'f32[64,32]{1,0:T(8,128)}', space=vmem, size = 0x8000, scoped, tag = 'scratch operand']
  %s0 = inlined_call_operand.vmem [shape: f32[64,32], index: 0, kind: input, shape index: {}]
  %s1 = inlined_call_operand.vmem [shape: f32[32,128], index: 1, kind: input, shape index: {}]
  %s2 = inlined_call_operand.vmem [shape: f32[32,128], index: 2, kind: input, shape index: {}]
  %s3 = inlined_call_operand.vmem [shape: f32[1,128], index: 3, kind: input, shape index: {}]
  %s4 = inlined_call_operand.vmem [shape: f32[32,128], index: 4, kind: input, shape index: {}]
  %s5 = inlined_call_operand.vmem [shape: f32[1,128], index: 5, kind: input, shape index: {}]
  %s6 = inlined_call_operand.hbm [shape: f32[64,128], index: 6, kind: output, shape index: {}]
  %s7 = sld [smem:[#allocation0]]
  $region34: #{tpu_custom_call.1} parent=0
    _
  %s9 = ssub.s32 1, %s7
  %s10 = scalar_select 0, %s9, %s7
  $region1: #{tpu_custom_call.1} parent=0
    #allocation3 [shape = 'u8[32768]{0}', space=vmem, size = 0x8000, scoped, tag = 'output window, operand 0, single buffered']
    #allocation4 [shape = 's32[1]{0}', space=sflag, size = 0x4, scoped, tag = 'scoped memory for tpu_custom_call.1']
    %11 = vsyncpa [#allocation4], 0
    // Predicated region
    $region2: #{tpu_custom_call.1} parent=1 // pred_check
      _
    $region3: #{tpu_custom_call.1} parent=1 // pred_check_branch
      %13 = sbr.rel (0) target = $region5
    $region4: #{tpu_custom_call.1} parent=1 // pred_region
      _
    $region5: #{tpu_custom_call.1} parent=1 // pred_fallthru
      _
    // Predicated region
    $region6: #{tpu_custom_call.1} parent=1 // pred_check
      _
    $region7: #{tpu_custom_call.1} parent=1 // pred_check_branch
      %15 = sbr.rel (0) target = $region9
    $region8: #{tpu_custom_call.1} parent=1 // pred_region
      _
    $region9: #{tpu_custom_call.1} parent=1 // pred_fallthru
      _
    // Predicated region
    $region10: #{tpu_custom_call.1} parent=1 // pred_check
      _
    $region11: #{tpu_custom_call.1} parent=1 // pred_check_branch
      %17 = sbr.rel (0) target = $region13
    $region12: #{tpu_custom_call.1} parent=1 // pred_region
      _
    $region13: #{tpu_custom_call.1} parent=1 // pred_fallthru
      _
    // Predicated region
    $region14: #{tpu_custom_call.1} parent=1 // pred_check
      _
    $region15: #{tpu_custom_call.1} parent=1 // pred_check_branch
      %19 = sbr.rel (0) target = $region17
    $region16: #{tpu_custom_call.1} parent=1 // pred_region
      _
    $region17: #{tpu_custom_call.1} parent=1 // pred_fallthru
      _
    // Predicated region
    $region18: #{tpu_custom_call.1} parent=1 // pred_check
      _
    $region19: #{tpu_custom_call.1} parent=1 // pred_check_branch
      %21 = sbr.rel (0) target = $region21
    $region20: #{tpu_custom_call.1} parent=1 // pred_region
      _
    $region21: #{tpu_custom_call.1} parent=1 // pred_fallthru
      _
    // Predicated region
    $region22: #{tpu_custom_call.1} parent=1 // pred_check
      _
    $region23: #{tpu_custom_call.1} parent=1 // pred_check_branch
      %23 = sbr.rel (0) target = $region25
    $region24: #{tpu_custom_call.1} parent=1 // pred_region
      _
    $region25: #{tpu_custom_call.1} parent=1 // pred_fallthru
      _
    %v24 = vld [vmem:[%s0] sm:$0xff]
    %v25 = vld [vmem:[%s0 + $0x8] sm:$0xff]
    %v26 = vld [vmem:[%s0 + $0x10] sm:$0xff]
    %v27 = vld [vmem:[%s0 + $0x18] sm:$0xff]
    %v28 = vld [vmem:[%s0 + $0x20] sm:$0xff]
    %v29 = vld [vmem:[%s0 + $0x28] sm:$0xff]
    %v30 = vld [vmem:[%s0 + $0x30] sm:$0xff]
    %v31 = vld [vmem:[%s0 + $0x38] sm:$0xff]
    %v32 = vld [vmem:[%s1] sm:$0xff]
    %v33 = vld [vmem:[%s1 + $0x8] sm:$0xff]
    %v34 = vld [vmem:[%s1 + $0x10] sm:$0xff]
    %v35 = vld [vmem:[%s1 + $0x18] sm:$0xff]
    %v36 = vld [vmem:[%s3] sm:$0x1]
    %v38 = vlaneseq
    %v39 = vshrl.u32 %v38, 7
    %v40 = vsub.s32 0, %v39
    %v41 = vrot.slane %v36, %v40
    %vm43 = vcmask 261120
    %v45 = vsel %vm43, %v24, 0
    %v48 = vsel %vm43, %v25, 0
    %v51 = vsel %vm43, %v26, 0
    %v54 = vsel %vm43, %v27, 0
    %v57 = vsel %vm43, %v28, 0
    %v60 = vsel %vm43, %v29, 0
    %v63 = vsel %vm43, %v30, 0
    %v66 = vsel %vm43, %v31, 0
    %68 = vmatprep.subr.mxu0 0.0
    %69 = vmatpush1.msra.mxu0 %v32
    %70 = vmatprep.subr.mxu0 0.0
    %71 = vmatpush1.msra.mxu0 %v33
    %72 = vmatprep.subr.mxu0 0.0
    %73 = vmatpush1.msra.mxu0 %v34
    %74 = vmatprep.subr.mxu0 0.0
    %75 = vmatpush1.msra.mxu0 %v35
    %76 = vmatprep.subr.mxu0 0.0
    %77 = vmatpush1.msra.mxu0 0.0
    %78 = vmatprep.subr.mxu0 0.0
    %79 = vmatpush1.msra.mxu0 0.0
    %80 = vmatprep.subr.mxu0 0.0
    %81 = vmatpush1.msra.mxu0 0.0
    %82 = vmatprep.subr.mxu0 0.0
    %83 = vmatpush1.msra.mxu0 0.0
    %84 = vmatprep.subr.mxu0 0.0
    %85 = vmatpush1.msra.mxu0 0.0
    %86 = vmatprep.subr.mxu0 0.0
    %87 = vmatpush1.msra.mxu0 0.0
    %88 = vmatprep.subr.mxu0 0.0
    %89 = vmatpush1.msra.mxu0 0.0
    %90 = vmatprep.subr.mxu0 0.0
    %91 = vmatpush1.msra.mxu0 0.0
    %92 = vmatprep.subr.mxu0 0.0
    %93 = vmatpush1.msra.mxu0 0.0
    %94 = vmatprep.subr.mxu0 0.0
    %95 = vmatpush1.msra.mxu0 0.0
    %96 = vmatprep.subr.mxu0 0.0
    %97 = vmatpush1.msra.mxu0 0.0
    %98 = vmatprep.subr.mxu0 0.0
    %99 = vmatpush1.msra.mxu0 0.0
    %100 = vmatprep.subr.mxu0 0.0
    %101 = vmatpush1.msra.mxu0 0.0
    %102 = vmatprep.subr.mxu0 0.0
    %103 = vmatpush1.msra.mxu0 0.0
    %104 = vmatprep.subr.mxu0 0.0
    %105 = vmatpush1.msra.mxu0 0.0
    %106 = vmatprep.subr.mxu0 0.0
    %107 = vmatpush1.msra.mxu0 0.0
    %108 = vmatprep.subr.mxu0 0.0
    %109 = vmatpush1.msra.mxu0 0.0
    %110 = vmatprep.subr.mxu0 0.0
    %111 = vmatpush1.msra.mxu0 0.0
    %112 = vmatprep.subr.mxu0 0.0
    %113 = vmatpush1.msra.mxu0 0.0
    %114 = vmatprep.subr.mxu0 0.0
    %115 = vmatpush1.msra.mxu0 0.0
    %116 = vmatprep.subr.mxu0 0.0
    %117 = vmatpush1.msra.mxu0 0.0
    %118 = vmatprep.subr.mxu0 0.0
    %119 = vmatpush1.msra.mxu0 0.0
    %120 = vmatprep.subr.mxu0 0.0
    %121 = vmatpush1.msra.mxu0 0.0
    %122 = vmatprep.subr.mxu0 0.0
    %123 = vmatpush1.msra.mxu0 0.0
    %124 = vmatprep.subr.mxu0 0.0
    %125 = vmatpush1.msra.mxu0 0.0
    %126 = vmatprep.subr.mxu0 0.0
    %127 = vmatpush1.msra.mxu0 0.0
    %128 = vmatprep.subr.mxu0 0.0
    %129 = vmatpush1.msra.mxu0 0.0
    %130 = vmatprep.subr.mxu0 0.0
    %131 = vmatpush1.msra.mxu0 0.0
    %132 = vmatprep.mubr.f32.mxu0 0.0
    %133 = vmatmul.mubr.f32.gmra.mrb[0].mxu0 %v45
    %v134 = vpop.f32.mrb[0].mxu0
    %v135 = vadd.f32 %v41, %v134
    %v136 = vpop.f32.mrb[0].mxu0
    %137 = vmatprep.mubr.f32.mxu0 0.0
    %138 = vmatmul.mubr.f32.gmra.mrb[0].mxu0 %v48
    %v139 = vpop.f32.mrb[0].mxu0
    %v140 = vadd.f32 %v41, %v139
    %v141 = vpop.f32.mrb[0].mxu0
    %142 = vmatprep.mubr.f32.mxu0 0.0
    %143 = vmatmul.mubr.f32.gmra.mrb[0].mxu0 %v51
    %v144 = vpop.f32.mrb[0].mxu0
    %v145 = vadd.f32 %v41, %v144
    %v146 = vpop.f32.mrb[0].mxu0
    %147 = vmatprep.mubr.f32.mxu0 0.0
    %148 = vmatmul.mubr.f32.gmra.mrb[0].mxu0 %v54
    %v149 = vpop.f32.mrb[0].mxu0
    %v150 = vadd.f32 %v41, %v149
    %v151 = vpop.f32.mrb[0].mxu0
    %152 = vmatprep.mubr.f32.mxu0 0.0
    %153 = vmatmul.mubr.f32.gmra.mrb[0].mxu0 %v57
    %v154 = vpop.f32.mrb[0].mxu0
    %v155 = vadd.f32 %v41, %v154
    %v156 = vpop.f32.mrb[0].mxu0
    %157 = vmatprep.mubr.f32.mxu0 0.0
    %158 = vmatmul.mubr.f32.gmra.mrb[0].mxu0 %v60
    %v159 = vpop.f32.mrb[0].mxu0
    %v160 = vadd.f32 %v41, %v159
    %v161 = vpop.f32.mrb[0].mxu0
    %162 = vmatprep.mubr.f32.mxu0 0.0
    %163 = vmatmul.mubr.f32.gmra.mrb[0].mxu0 %v63
    %v164 = vpop.f32.mrb[0].mxu0
    %v165 = vadd.f32 %v41, %v164
    %v166 = vpop.f32.mrb[0].mxu0
    %167 = vmatprep.mubr.f32.mxu0 0.0
    %168 = vmatmul.mubr.f32.gmra.mrb[0].mxu0 %v66
    %v169 = vpop.f32.mrb[0].mxu0
    %v170 = vadd.f32 %v41, %v169
    %v171 = vpop.f32.mrb[0].mxu0
    %172 = vdwg.mxu0
    %v173 = vld [vmem:[%s2] sm:$0xff]
    %v174 = vld [vmem:[%s2 + $0x8] sm:$0xff]
    %v175 = vld [vmem:[%s2 + $0x10] sm:$0xff]
    %v176 = vld [vmem:[%s2 + $0x18] sm:$0xff]
    %v178 = vsel %vm43, 0.0, 0
    %180 = vmatprep.subr.mxu0 0.0
    %181 = vmatpush1.msra.mxu0 %v173
    %182 = vmatprep.subr.mxu0 0.0
    %183 = vmatpush1.msra.mxu0 %v174
    %184 = vmatprep.subr.mxu0 0.0
    %185 = vmatpush1.msra.mxu0 %v175
    %186 = vmatprep.subr.mxu0 0.0
    %187 = vmatpush1.msra.mxu0 %v176
    %188 = vmatprep.subr.mxu0 0.0
    %189 = vmatpush1.msra.mxu0 0.0
    %190 = vmatprep.subr.mxu0 0.0
    %191 = vmatpush1.msra.mxu0 0.0
    %192 = vmatprep.subr.mxu0 0.0
    %193 = vmatpush1.msra.mxu0 0.0
    %194 = vmatprep.subr.mxu0 0.0
    %195 = vmatpush1.msra.mxu0 0.0
    %196 = vmatprep.subr.mxu0 0.0
    %197 = vmatpush1.msra.mxu0 0.0
    %198 = vmatprep.subr.mxu0 0.0
    %199 = vmatpush1.msra.mxu0 0.0
    %200 = vmatprep.subr.mxu0 0.0
    %201 = vmatpush1.msra.mxu0 0.0
    %202 = vmatprep.subr.mxu0 0.0
    %203 = vmatpush1.msra.mxu0 0.0
    %204 = vmatprep.subr.mxu0 0.0
    %205 = vmatpush1.msra.mxu0 0.0
    %206 = vmatprep.subr.mxu0 0.0
    %207 = vmatpush1.msra.mxu0 0.0
    %208 = vmatprep.subr.mxu0 0.0
    %209 = vmatpush1.msra.mxu0 0.0
    %210 = vmatprep.subr.mxu0 0.0
    %211 = vmatpush1.msra.mxu0 0.0
    %212 = vmatprep.subr.mxu0 0.0
    %213 = vmatpush1.msra.mxu0 0.0
    %214 = vmatprep.subr.mxu0 0.0
    %215 = vmatpush1.msra.mxu0 0.0
    %216 = vmatprep.subr.mxu0 0.0
    %217 = vmatpush1.msra.mxu0 0.0
    %218 = vmatprep.subr.mxu0 0.0
    %219 = vmatpush1.msra.mxu0 0.0
    %220 = vmatprep.subr.mxu0 0.0
    %221 = vmatpush1.msra.mxu0 0.0
    %222 = vmatprep.subr.mxu0 0.0
    %223 = vmatpush1.msra.mxu0 0.0
    %224 = vmatprep.subr.mxu0 0.0
    %225 = vmatpush1.msra.mxu0 0.0
    %226 = vmatprep.subr.mxu0 0.0
    %227 = vmatpush1.msra.mxu0 0.0
    %228 = vmatprep.subr.mxu0 0.0
    %229 = vmatpush1.msra.mxu0 0.0
    %230 = vmatprep.subr.mxu0 0.0
    %231 = vmatpush1.msra.mxu0 0.0
    %232 = vmatprep.subr.mxu0 0.0
    %233 = vmatpush1.msra.mxu0 0.0
    %234 = vmatprep.subr.mxu0 0.0
    %235 = vmatpush1.msra.mxu0 0.0
    %236 = vmatprep.subr.mxu0 0.0
    %237 = vmatpush1.msra.mxu0 0.0
    %238 = vmatprep.subr.mxu0 0.0
    %239 = vmatpush1.msra.mxu0 0.0
    %240 = vmatprep.subr.mxu0 0.0
    %241 = vmatpush1.msra.mxu0 0.0
    %242 = vmatprep.subr.mxu0 0.0
    %243 = vmatpush1.msra.mxu0 0.0
    %244 = vmatprep.mubr.f32.mxu0 0.0
    %245 = vmatmul.mubr.f32.gmra.mrb[0].mxu0 %v178
    %v246 = vpop.f32.mrb[0].mxu0
    %v247 = vadd.f32 0.0, %v246
    %v248 = vpop.f32.mrb[0].mxu0
    %249 = vdwg.mxu0
    %v250 = vadd.f32 %v135, %v247
    %v251 = vxor.u32 %v250, 2147483648
    %v252 = vmul.f32 %v251, 1.442695
    %v253 = vpow.pop %v252
    %v254 = vadd.f32 %v253, 1.0
    %v255 = vrcp.pop %v254
    %v256 = vmul.f32 1.0, %v255
    %v257 = vtanh.pop %v250
    %v258 = vmul.f32 %v256, 0.0
    %260 = vrot.lane.b32.xlu0 %v257, 32
    %v261 = vpop.permute.xlu0 %260
    %v263 = vmul.f32 %v256, %v261
    %265 = vrot.lane.b32.xlu0 %v263, 32
    %v266 = vpop.permute.xlu0 %265
    %v268 = vadd.f32 %v258, %v266
    %v269 = vtanh.pop %v268
    %271 = vrot.lane.b32.xlu0 %v269, 32
    %v272 = vpop.permute.xlu0 %271
    %v274 = vmul.f32 %v256, %v272
    %276 = vrot.lane.b32.xlu0 %v274, 64
    %v277 = vpop.permute.xlu0 %276
    %279 = vst.msk [vmem:[#allocation2] sm:$0xff] %vm43, %v277
    %v280 = vsel %vm43, %v277, 0
    %282 = vmatprep.subr.mxu0 0.0
    %283 = vmatpush1.msra.mxu0 %v173
    %284 = vmatprep.subr.mxu0 0.0
    %285 = vmatpush1.msra.mxu0 %v174
    %286 = vmatprep.subr.mxu0 0.0
    %287 = vmatpush1.msra.mxu0 %v175
    %288 = vmatprep.subr.mxu0 0.0
    %289 = vmatpush1.msra.mxu0 %v176
    %290 = vmatprep.subr.mxu0 0.0
    %291 = vmatpush1.msra.mxu0 0.0
    %292 = vmatprep.subr.mxu0 0.0
    %293 = vmatpush1.msra.mxu0 0.0
    %294 = vmatprep.subr.mxu0 0.0
    %295 = vmatpush1.msra.mxu0 0.0
    %296 = vmatprep.subr.mxu0 0.0
    %297 = vmatpush1.msra.mxu0 0.0
    %298 = vmatprep.subr.mxu0 0.0
    %299 = vmatpush1.msra.mxu0 0.0
    %300 = vmatprep.subr.mxu0 0.0
    %301 = vmatpush1.msra.mxu0 0.0
    %302 = vmatprep.subr.mxu0 0.0
    %303 = vmatpush1.msra.mxu0 0.0
    %304 = vmatprep.subr.mxu0 0.0
    %305 = vmatpush1.msra.mxu0 0.0
    %306 = vmatprep.subr.mxu0 0.0
    %307 = vmatpush1.msra.mxu0 0.0
    %308 = vmatprep.subr.mxu0 0.0
    %309 = vmatpush1.msra.mxu0 0.0
    %310 = vmatprep.subr.mxu0 0.0
    %311 = vmatpush1.msra.mxu0 0.0
    %312 = vmatprep.subr.mxu0 0.0
    %313 = vmatpush1.msra.mxu0 0.0
    %314 = vmatprep.subr.mxu0 0.0
    %315 = vmatpush1.msra.mxu0 0.0
    %316 = vmatprep.subr.mxu0 0.0
    %317 = vmatpush1.msra.mxu0 0.0
    %318 = vmatprep.subr.mxu0 0.0
    %319 = vmatpush1.msra.mxu0 0.0
    %320 = vmatprep.subr.mxu0 0.0
    %321 = vmatpush1.msra.mxu0 0.0
    %322 = vmatprep.subr.mxu0 0.0
    %323 = vmatpush1.msra.mxu0 0.0
    %324 = vmatprep.subr.mxu0 0.0
    %325 = vmatpush1.msra.mxu0 0.0
    %326 = vmatprep.subr.mxu0 0.0
    %327 = vmatpush1.msra.mxu0 0.0
    %328 = vmatprep.subr.mxu0 0.0
    %329 = vmatpush1.msra.mxu0 0.0
    %330 = vmatprep.subr.mxu0 0.0
    %331 = vmatpush1.msra.mxu0 0.0
    %332 = vmatprep.subr.mxu0 0.0
    %333 = vmatpush1.msra.mxu0 0.0
    %334 = vmatprep.subr.mxu0 0.0
    %335 = vmatpush1.msra.mxu0 0.0
    %336 = vmatprep.subr.mxu0 0.0
    %337 = vmatpush1.msra.mxu0 0.0
    %338 = vmatprep.subr.mxu0 0.0
    %339 = vmatpush1.msra.mxu0 0.0
    %340 = vmatprep.subr.mxu0 0.0
    %341 = vmatpush1.msra.mxu0 0.0
    %342 = vmatprep.subr.mxu0 0.0
    %343 = vmatpush1.msra.mxu0 0.0
    %344 = vmatprep.subr.mxu0 0.0
    %345 = vmatpush1.msra.mxu0 0.0
    %346 = vmatprep.mubr.f32.mxu0 0.0
    %347 = vmatmul.mubr.f32.gmra.mrb[0].mxu0 %v280
    %v348 = vpop.f32.mrb[0].mxu0
    %v349 = vadd.f32 0.0, %v348
    %v350 = vpop.f32.mrb[0].mxu0
    %351 = vdwg.mxu0
    %v352 = vadd.f32 %v140, %v349
    %v353 = vxor.u32 %v352, 2147483648
    %v354 = vmul.f32 %v353, 1.442695
    %v355 = vpow.pop %v354
    %v356 = vadd.f32 %v355, 1.0
    %v357 = vrcp.pop %v356
    %v358 = vmul.f32 1.0, %v357
    %v359 = vtanh.pop %v352
    %v360 = vmul.f32 %v358, %v268
    %362 = vrot.lane.b32.xlu0 %v359, 32
    %v363 = vpop.permute.xlu0 %362
    %v365 = vmul.f32 %v358, %v363
    %367 = vrot.lane.b32.xlu0 %v365, 32
    %v368 = vpop.permute.xlu0 %367
    %v370 = vadd.f32 %v360, %v368
    %v371 = vtanh.pop %v370
    %373 = vrot.lane.b32.xlu0 %v371, 32
    %v374 = vpop.permute.xlu0 %373
    %v376 = vmul.f32 %v358, %v374
    %378 = vrot.lane.b32.xlu0 %v376, 64
    %v379 = vpop.permute.xlu0 %378
    %381 = vst.msk [vmem:[#allocation2 + $0x8] sm:$0xff] %vm43, %v379
    %v382 = vsel %vm43, %v379, 0
    %384 = vmatprep.subr.mxu0 0.0
    %385 = vmatpush1.msra.mxu0 %v173
    %386 = vmatprep.subr.mxu0 0.0
    %387 = vmatpush1.msra.mxu0 %v174
    %388 = vmatprep.subr.mxu0 0.0
    %389 = vmatpush1.msra.mxu0 %v175
    %390 = vmatprep.subr.mxu0 0.0
    %391 = vmatpush1.msra.mxu0 %v176
    %392 = vmatprep.subr.mxu0 0.0
    %393 = vmatpush1.msra.mxu0 0.0
    %394 = vmatprep.subr.mxu0 0.0
    %395 = vmatpush1.msra.mxu0 0.0
    %396 = vmatprep.subr.mxu0 0.0
    %397 = vmatpush1.msra.mxu0 0.0
    %398 = vmatprep.subr.mxu0 0.0
    %399 = vmatpush1.msra.mxu0 0.0
    %400 = vmatprep.subr.mxu0 0.0
    %401 = vmatpush1.msra.mxu0 0.0
    %402 = vmatprep.subr.mxu0 0.0
    %403 = vmatpush1.msra.mxu0 0.0
    %404 = vmatprep.subr.mxu0 0.0
    %405 = vmatpush1.msra.mxu0 0.0
    %406 = vmatprep.subr.mxu0 0.0
    %407 = vmatpush1.msra.mxu0 0.0
    %408 = vmatprep.subr.mxu0 0.0
    %409 = vmatpush1.msra.mxu0 0.0
    %410 = vmatprep.subr.mxu0 0.0
    %411 = vmatpush1.msra.mxu0 0.0
    %412 = vmatprep.subr.mxu0 0.0
    %413 = vmatpush1.msra.mxu0 0.0
    %414 = vmatprep.subr.mxu0 0.0
    %415 = vmatpush1.msra.mxu0 0.0
    %416 = vmatprep.subr.mxu0 0.0
    %417 = vmatpush1.msra.mxu0 0.0
    %418 = vmatprep.subr.mxu0 0.0
    %419 = vmatpush1.msra.mxu0 0.0
    %420 = vmatprep.subr.mxu0 0.0
    %421 = vmatpush1.msra.mxu0 0.0
    %422 = vmatprep.subr.mxu0 0.0
    %423 = vmatpush1.msra.mxu0 0.0
    %424 = vmatprep.subr.mxu0 0.0
    %425 = vmatpush1.msra.mxu0 0.0
    %426 = vmatprep.subr.mxu0 0.0
    %427 = vmatpush1.msra.mxu0 0.0
    %428 = vmatprep.subr.mxu0 0.0
    %429 = vmatpush1.msra.mxu0 0.0
    %430 = vmatprep.subr.mxu0 0.0
    %431 = vmatpush1.msra.mxu0 0.0
    %432 = vmatprep.subr.mxu0 0.0
    %433 = vmatpush1.msra.mxu0 0.0
    %434 = vmatprep.subr.mxu0 0.0
    %435 = vmatpush1.msra.mxu0 0.0
    %436 = vmatprep.subr.mxu0 0.0
    %437 = vmatpush1.msra.mxu0 0.0
    %438 = vmatprep.subr.mxu0 0.0
    %439 = vmatpush1.msra.mxu0 0.0
    %440 = vmatprep.subr.mxu0 0.0
    %441 = vmatpush1.msra.mxu0 0.0
    %442 = vmatprep.subr.mxu0 0.0
    %443 = vmatpush1.msra.mxu0 0.0
    %444 = vmatprep.subr.mxu0 0.0
    %445 = vmatpush1.msra.mxu0 0.0
    %446 = vmatprep.subr.mxu0 0.0
    %447 = vmatpush1.msra.mxu0 0.0
    %448 = vmatprep.mubr.f32.mxu0 0.0
    %449 = vmatmul.mubr.f32.gmra.mrb[0].mxu0 %v382
    %v450 = vpop.f32.mrb[0].mxu0
    %v451 = vadd.f32 0.0, %v450
    %v452 = vpop.f32.mrb[0].mxu0
    %453 = vdwg.mxu0
    %v454 = vadd.f32 %v145, %v451
    %v455 = vxor.u32 %v454, 2147483648
    %v456 = vmul.f32 %v455, 1.442695
    %v457 = vpow.pop %v456
    %v458 = vadd.f32 %v457, 1.0
    %v459 = vrcp.pop %v458
    %v460 = vmul.f32 1.0, %v459
    %v461 = vtanh.pop %v454
    %v462 = vmul.f32 %v460, %v370
    %464 = vrot.lane.b32.xlu0 %v461, 32
    %v465 = vpop.permute.xlu0 %464
    %v467 = vmul.f32 %v460, %v465
    %469 = vrot.lane.b32.xlu0 %v467, 32
    %v470 = vpop.permute.xlu0 %469
    %v472 = vadd.f32 %v462, %v470
    %v473 = vtanh.pop %v472
    %475 = vrot.lane.b32.xlu0 %v473, 32
    %v476 = vpop.permute.xlu0 %475
    %v478 = vmul.f32 %v460, %v476
    %480 = vrot.lane.b32.xlu0 %v478, 64
    %v481 = vpop.permute.xlu0 %480
    %483 = vst.msk [vmem:[#allocation2 + $0x10] sm:$0xff] %vm43, %v481
    %v484 = vsel %vm43, %v481, 0
    %486 = vmatprep.subr.mxu0 0.0
    %487 = vmatpush1.msra.mxu0 %v173
    %488 = vmatprep.subr.mxu0 0.0
    %489 = vmatpush1.msra.mxu0 %v174
    %490 = vmatprep.subr.mxu0 0.0
    %491 = vmatpush1.msra.mxu0 %v175
    %492 = vmatprep.subr.mxu0 0.0
    %493 = vmatpush1.msra.mxu0 %v176
    %494 = vmatprep.subr.mxu0 0.0
    %495 = vmatpush1.msra.mxu0 0.0
    %496 = vmatprep.subr.mxu0 0.0
    %497 = vmatpush1.msra.mxu0 0.0
    %498 = vmatprep.subr.mxu0 0.0
    %499 = vmatpush1.msra.mxu0 0.0
    %500 = vmatprep.subr.mxu0 0.0
    %501 = vmatpush1.msra.mxu0 0.0
    %502 = vmatprep.subr.mxu0 0.0
    %503 = vmatpush1.msra.mxu0 0.0
    %504 = vmatprep.subr.mxu0 0.0
    %505 = vmatpush1.msra.mxu0 0.0
    %506 = vmatprep.subr.mxu0 0.0
    %507 = vmatpush1.msra.mxu0 0.0
    %508 = vmatprep.subr.mxu0 0.0
    %509 = vmatpush1.msra.mxu0 0.0
    %510 = vmatprep.subr.mxu0 0.0
    %511 = vmatpush1.msra.mxu0 0.0
    %512 = vmatprep.subr.mxu0 0.0
    %513 = vmatpush1.msra.mxu0 0.0
    %514 = vmatprep.subr.mxu0 0.0
    %515 = vmatpush1.msra.mxu0 0.0
    %516 = vmatprep.subr.mxu0 0.0
    %517 = vmatpush1.msra.mxu0 0.0
    %518 = vmatprep.subr.mxu0 0.0
    %519 = vmatpush1.msra.mxu0 0.0
    %520 = vmatprep.subr.mxu0 0.0
    %521 = vmatpush1.msra.mxu0 0.0
    %522 = vmatprep.subr.mxu0 0.0
    %523 = vmatpush1.msra.mxu0 0.0
    %524 = vmatprep.subr.mxu0 0.0
    %525 = vmatpush1.msra.mxu0 0.0
    %526 = vmatprep.subr.mxu0 0.0
    %527 = vmatpush1.msra.mxu0 0.0
    %528 = vmatprep.subr.mxu0 0.0
    %529 = vmatpush1.msra.mxu0 0.0
    %530 = vmatprep.subr.mxu0 0.0
    %531 = vmatpush1.msra.mxu0 0.0
    %532 = vmatprep.subr.mxu0 0.0
    %533 = vmatpush1.msra.mxu0 0.0
    %534 = vmatprep.subr.mxu0 0.0
    %535 = vmatpush1.msra.mxu0 0.0
    %536 = vmatprep.subr.mxu0 0.0
    %537 = vmatpush1.msra.mxu0 0.0
    %538 = vmatprep.subr.mxu0 0.0
    %539 = vmatpush1.msra.mxu0 0.0
    %540 = vmatprep.subr.mxu0 0.0
    %541 = vmatpush1.msra.mxu0 0.0
    %542 = vmatprep.subr.mxu0 0.0
    %543 = vmatpush1.msra.mxu0 0.0
    %544 = vmatprep.subr.mxu0 0.0
    %545 = vmatpush1.msra.mxu0 0.0
    %546 = vmatprep.subr.mxu0 0.0
    %547 = vmatpush1.msra.mxu0 0.0
    %548 = vmatprep.subr.mxu0 0.0
    %549 = vmatpush1.msra.mxu0 0.0
    %550 = vmatprep.mubr.f32.mxu0 0.0
    %551 = vmatmul.mubr.f32.gmra.mrb[0].mxu0 %v484
    %v552 = vpop.f32.mrb[0].mxu0
    %v553 = vadd.f32 0.0, %v552
    %v554 = vpop.f32.mrb[0].mxu0
    %555 = vdwg.mxu0
    %v556 = vadd.f32 %v150, %v553
    %v557 = vxor.u32 %v556, 2147483648
    %v558 = vmul.f32 %v557, 1.442695
    %v559 = vpow.pop %v558
    %v560 = vadd.f32 %v559, 1.0
    %v561 = vrcp.pop %v560
    %v562 = vmul.f32 1.0, %v561
    %v563 = vtanh.pop %v556
    %v564 = vmul.f32 %v562, %v472
    %566 = vrot.lane.b32.xlu0 %v563, 32
    %v567 = vpop.permute.xlu0 %566
    %v569 = vmul.f32 %v562, %v567
    %571 = vrot.lane.b32.xlu0 %v569, 32
    %v572 = vpop.permute.xlu0 %571
    %v574 = vadd.f32 %v564, %v572
    %v575 = vtanh.pop %v574
    %577 = vrot.lane.b32.xlu0 %v575, 32
    %v578 = vpop.permute.xlu0 %577
    %v580 = vmul.f32 %v562, %v578
    %582 = vrot.lane.b32.xlu0 %v580, 64
    %v583 = vpop.permute.xlu0 %582
    %585 = vst.msk [vmem:[#allocation2 + $0x18] sm:$0xff] %vm43, %v583
    %v586 = vsel %vm43, %v583, 0
    %588 = vmatprep.subr.mxu0 0.0
    %589 = vmatpush1.msra.mxu0 %v173
    %590 = vmatprep.subr.mxu0 0.0
    %591 = vmatpush1.msra.mxu0 %v174
    %592 = vmatprep.subr.mxu0 0.0
    %593 = vmatpush1.msra.mxu0 %v175
    %594 = vmatprep.subr.mxu0 0.0
    %595 = vmatpush1.msra.mxu0 %v176
    %596 = vmatprep.subr.mxu0 0.0
    %597 = vmatpush1.msra.mxu0 0.0
    %598 = vmatprep.subr.mxu0 0.0
    %599 = vmatpush1.msra.mxu0 0.0
    %600 = vmatprep.subr.mxu0 0.0
    %601 = vmatpush1.msra.mxu0 0.0
    %602 = vmatprep.subr.mxu0 0.0
    %603 = vmatpush1.msra.mxu0 0.0
    %604 = vmatprep.subr.mxu0 0.0
    %605 = vmatpush1.msra.mxu0 0.0
    %606 = vmatprep.subr.mxu0 0.0
    %607 = vmatpush1.msra.mxu0 0.0
    %608 = vmatprep.subr.mxu0 0.0
    %609 = vmatpush1.msra.mxu0 0.0
    %610 = vmatprep.subr.mxu0 0.0
    %611 = vmatpush1.msra.mxu0 0.0
    %612 = vmatprep.subr.mxu0 0.0
    %613 = vmatpush1.msra.mxu0 0.0
    %614 = vmatprep.subr.mxu0 0.0
    %615 = vmatpush1.msra.mxu0 0.0
    %616 = vmatprep.subr.mxu0 0.0
    %617 = vmatpush1.msra.mxu0 0.0
    %618 = vmatprep.subr.mxu0 0.0
    %619 = vmatpush1.msra.mxu0 0.0
    %620 = vmatprep.subr.mxu0 0.0
    %621 = vmatpush1.msra.mxu0 0.0
    %622 = vmatprep.subr.mxu0 0.0
    %623 = vmatpush1.msra.mxu0 0.0
    %624 = vmatprep.subr.mxu0 0.0
    %625 = vmatpush1.msra.mxu0 0.0
    %626 = vmatprep.subr.mxu0 0.0
    %627 = vmatpush1.msra.mxu0 0.0
    %628 = vmatprep.subr.mxu0 0.0
    %629 = vmatpush1.msra.mxu0 0.0
    %630 = vmatprep.subr.mxu0 0.0
    %631 = vmatpush1.msra.mxu0 0.0
    %632 = vmatprep.subr.mxu0 0.0
    %633 = vmatpush1.msra.mxu0 0.0
    %634 = vmatprep.subr.mxu0 0.0
    %635 = vmatpush1.msra.mxu0 0.0
    %636 = vmatprep.subr.mxu0 0.0
    %637 = vmatpush1.msra.mxu0 0.0
    %638 = vmatprep.subr.mxu0 0.0
    %639 = vmatpush1.msra.mxu0 0.0
    %640 = vmatprep.subr.mxu0 0.0
    %641 = vmatpush1.msra.mxu0 0.0
    %642 = vmatprep.subr.mxu0 0.0
    %643 = vmatpush1.msra.mxu0 0.0
    %644 = vmatprep.subr.mxu0 0.0
    %645 = vmatpush1.msra.mxu0 0.0
    %646 = vmatprep.subr.mxu0 0.0
    %647 = vmatpush1.msra.mxu0 0.0
    %648 = vmatprep.subr.mxu0 0.0
    %649 = vmatpush1.msra.mxu0 0.0
    %650 = vmatprep.subr.mxu0 0.0
    %651 = vmatpush1.msra.mxu0 0.0
    %652 = vmatprep.mubr.f32.mxu0 0.0
    %653 = vmatmul.mubr.f32.gmra.mrb[0].mxu0 %v586
    %v654 = vpop.f32.mrb[0].mxu0
    %v655 = vadd.f32 0.0, %v654
    %v656 = vpop.f32.mrb[0].mxu0
    %657 = vdwg.mxu0
    %v658 = vadd.f32 %v155, %v655
    %v659 = vxor.u32 %v658, 2147483648
    %v660 = vmul.f32 %v659, 1.442695
    %v661 = vpow.pop %v660
    %v662 = vadd.f32 %v661, 1.0
    %v663 = vrcp.pop %v662
    %v664 = vmul.f32 1.0, %v663
    %v665 = vtanh.pop %v658
    %v666 = vmul.f32 %v664, %v574
    %668 = vrot.lane.b32.xlu0 %v665, 32
    %v669 = vpop.permute.xlu0 %668
    %v671 = vmul.f32 %v664, %v669
    %673 = vrot.lane.b32.xlu0 %v671, 32
    %v674 = vpop.permute.xlu0 %673
    %v676 = vadd.f32 %v666, %v674
    %v677 = vtanh.pop %v676
    %679 = vrot.lane.b32.xlu0 %v677, 32
    %v680 = vpop.permute.xlu0 %679
    %v682 = vmul.f32 %v664, %v680
    %684 = vrot.lane.b32.xlu0 %v682, 64
    %v685 = vpop.permute.xlu0 %684
    %687 = vst.msk [vmem:[#allocation2 + $0x20] sm:$0xff] %vm43, %v685
    %v688 = vsel %vm43, %v685, 0
    %690 = vmatprep.subr.mxu0 0.0
    %691 = vmatpush1.msra.mxu0 %v173
    %692 = vmatprep.subr.mxu0 0.0
    %693 = vmatpush1.msra.mxu0 %v174
    %694 = vmatprep.subr.mxu0 0.0
    %695 = vmatpush1.msra.mxu0 %v175
    %696 = vmatprep.subr.mxu0 0.0
    %697 = vmatpush1.msra.mxu0 %v176
    %698 = vmatprep.subr.mxu0 0.0
    %699 = vmatpush1.msra.mxu0 0.0
    %700 = vmatprep.subr.mxu0 0.0
    %701 = vmatpush1.msra.mxu0 0.0
    %702 = vmatprep.subr.mxu0 0.0
    %703 = vmatpush1.msra.mxu0 0.0
    %704 = vmatprep.subr.mxu0 0.0
    %705 = vmatpush1.msra.mxu0 0.0
    %706 = vmatprep.subr.mxu0 0.0
    %707 = vmatpush1.msra.mxu0 0.0
    %708 = vmatprep.subr.mxu0 0.0
    %709 = vmatpush1.msra.mxu0 0.0
    %710 = vmatprep.subr.mxu0 0.0
    %711 = vmatpush1.msra.mxu0 0.0
    %712 = vmatprep.subr.mxu0 0.0
    %713 = vmatpush1.msra.mxu0 0.0
    %714 = vmatprep.subr.mxu0 0.0
    %715 = vmatpush1.msra.mxu0 0.0
    %716 = vmatprep.subr.mxu0 0.0
    %717 = vmatpush1.msra.mxu0 0.0
    %718 = vmatprep.subr.mxu0 0.0
    %719 = vmatpush1.msra.mxu0 0.0
    %720 = vmatprep.subr.mxu0 0.0
    %721 = vmatpush1.msra.mxu0 0.0
    %722 = vmatprep.subr.mxu0 0.0
    %723 = vmatpush1.msra.mxu0 0.0
    %724 = vmatprep.subr.mxu0 0.0
    %725 = vmatpush1.msra.mxu0 0.0
    %726 = vmatprep.subr.mxu0 0.0
    %727 = vmatpush1.msra.mxu0 0.0
    %728 = vmatprep.subr.mxu0 0.0
    %729 = vmatpush1.msra.mxu0 0.0
    %730 = vmatprep.subr.mxu0 0.0
    %731 = vmatpush1.msra.mxu0 0.0
    %732 = vmatprep.subr.mxu0 0.0
    %733 = vmatpush1.msra.mxu0 0.0
    %734 = vmatprep.subr.mxu0 0.0
    %735 = vmatpush1.msra.mxu0 0.0
    %736 = vmatprep.subr.mxu0 0.0
    %737 = vmatpush1.msra.mxu0 0.0
    %738 = vmatprep.subr.mxu0 0.0
    %739 = vmatpush1.msra.mxu0 0.0
    %740 = vmatprep.subr.mxu0 0.0
    %741 = vmatpush1.msra.mxu0 0.0
    %742 = vmatprep.subr.mxu0 0.0
    %743 = vmatpush1.msra.mxu0 0.0
    %744 = vmatprep.subr.mxu0 0.0
    %745 = vmatpush1.msra.mxu0 0.0
    %746 = vmatprep.subr.mxu0 0.0
    %747 = vmatpush1.msra.mxu0 0.0
    %748 = vmatprep.subr.mxu0 0.0
    %749 = vmatpush1.msra.mxu0 0.0
    %750 = vmatprep.subr.mxu0 0.0
    %751 = vmatpush1.msra.mxu0 0.0
    %752 = vmatprep.subr.mxu0 0.0
    %753 = vmatpush1.msra.mxu0 0.0
    %754 = vmatprep.mubr.f32.mxu0 0.0
    %755 = vmatmul.mubr.f32.gmra.mrb[0].mxu0 %v688
    %v756 = vpop.f32.mrb[0].mxu0
    %v757 = vadd.f32 0.0, %v756
    %v758 = vpop.f32.mrb[0].mxu0
    %759 = vdwg.mxu0
    %v760 = vadd.f32 %v160, %v757
    %v761 = vxor.u32 %v760, 2147483648
    %v762 = vmul.f32 %v761, 1.442695
    %v763 = vpow.pop %v762
    %v764 = vadd.f32 %v763, 1.0
    %v765 = vrcp.pop %v764
    %v766 = vmul.f32 1.0, %v765
    %v767 = vtanh.pop %v760
    %v768 = vmul.f32 %v766, %v676
    %770 = vrot.lane.b32.xlu0 %v767, 32
    %v771 = vpop.permute.xlu0 %770
    %v773 = vmul.f32 %v766, %v771
    %775 = vrot.lane.b32.xlu0 %v773, 32
    %v776 = vpop.permute.xlu0 %775
    %v778 = vadd.f32 %v768, %v776
    %v779 = vtanh.pop %v778
    %781 = vrot.lane.b32.xlu0 %v779, 32
    %v782 = vpop.permute.xlu0 %781
    %v784 = vmul.f32 %v766, %v782
    %786 = vrot.lane.b32.xlu0 %v784, 64
    %v787 = vpop.permute.xlu0 %786
    %789 = vst.msk [vmem:[#allocation2 + $0x28] sm:$0xff] %vm43, %v787
    %v790 = vsel %vm43, %v787, 0
    %792 = vmatprep.subr.mxu0 0.0
    %793 = vmatpush1.msra.mxu0 %v173
    %794 = vmatprep.subr.mxu0 0.0
    %795 = vmatpush1.msra.mxu0 %v174
    %796 = vmatprep.subr.mxu0 0.0
    %797 = vmatpush1.msra.mxu0 %v175
    %798 = vmatprep.subr.mxu0 0.0
    %799 = vmatpush1.msra.mxu0 %v176
    %800 = vmatprep.subr.mxu0 0.0
    %801 = vmatpush1.msra.mxu0 0.0
    %802 = vmatprep.subr.mxu0 0.0
    %803 = vmatpush1.msra.mxu0 0.0
    %804 = vmatprep.subr.mxu0 0.0
    %805 = vmatpush1.msra.mxu0 0.0
    %806 = vmatprep.subr.mxu0 0.0
    %807 = vmatpush1.msra.mxu0 0.0
    %808 = vmatprep.subr.mxu0 0.0
    %809 = vmatpush1.msra.mxu0 0.0
    %810 = vmatprep.subr.mxu0 0.0
    %811 = vmatpush1.msra.mxu0 0.0
    %812 = vmatprep.subr.mxu0 0.0
    %813 = vmatpush1.msra.mxu0 0.0
    %814 = vmatprep.subr.mxu0 0.0
    %815 = vmatpush1.msra.mxu0 0.0
    %816 = vmatprep.subr.mxu0 0.0
    %817 = vmatpush1.msra.mxu0 0.0
    %818 = vmatprep.subr.mxu0 0.0
    %819 = vmatpush1.msra.mxu0 0.0
    %820 = vmatprep.subr.mxu0 0.0
    %821 = vmatpush1.msra.mxu0 0.0
    %822 = vmatprep.subr.mxu0 0.0
    %823 = vmatpush1.msra.mxu0 0.0
    %824 = vmatprep.subr.mxu0 0.0
    %825 = vmatpush1.msra.mxu0 0.0
    %826 = vmatprep.subr.mxu0 0.0
    %827 = vmatpush1.msra.mxu0 0.0
    %828 = vmatprep.subr.mxu0 0.0
    %829 = vmatpush1.msra.mxu0 0.0
    %830 = vmatprep.subr.mxu0 0.0
    %831 = vmatpush1.msra.mxu0 0.0
    %832 = vmatprep.subr.mxu0 0.0
    %833 = vmatpush1.msra.mxu0 0.0
    %834 = vmatprep.subr.mxu0 0.0
    %835 = vmatpush1.msra.mxu0 0.0
    %836 = vmatprep.subr.mxu0 0.0
    %837 = vmatpush1.msra.mxu0 0.0
    %838 = vmatprep.subr.mxu0 0.0
    %839 = vmatpush1.msra.mxu0 0.0
    %840 = vmatprep.subr.mxu0 0.0
    %841 = vmatpush1.msra.mxu0 0.0
    %842 = vmatprep.subr.mxu0 0.0
    %843 = vmatpush1.msra.mxu0 0.0
    %844 = vmatprep.subr.mxu0 0.0
    %845 = vmatpush1.msra.mxu0 0.0
    %846 = vmatprep.subr.mxu0 0.0
    %847 = vmatpush1.msra.mxu0 0.0
    %848 = vmatprep.subr.mxu0 0.0
    %849 = vmatpush1.msra.mxu0 0.0
    %850 = vmatprep.subr.mxu0 0.0
    %851 = vmatpush1.msra.mxu0 0.0
    %852 = vmatprep.subr.mxu0 0.0
    %853 = vmatpush1.msra.mxu0 0.0
    %854 = vmatprep.subr.mxu0 0.0
    %855 = vmatpush1.msra.mxu0 0.0
    %856 = vmatprep.mubr.f32.mxu0 0.0
    %857 = vmatmul.mubr.f32.gmra.mrb[0].mxu0 %v790
    %v858 = vpop.f32.mrb[0].mxu0
    %v859 = vadd.f32 0.0, %v858
    %v860 = vpop.f32.mrb[0].mxu0
    %861 = vdwg.mxu0
    %v862 = vadd.f32 %v165, %v859
    %v863 = vxor.u32 %v862, 2147483648
    %v864 = vmul.f32 %v863, 1.442695
    %v865 = vpow.pop %v864
    %v866 = vadd.f32 %v865, 1.0
    %v867 = vrcp.pop %v866
    %v868 = vmul.f32 1.0, %v867
    %v869 = vtanh.pop %v862
    %v870 = vmul.f32 %v868, %v778
    %872 = vrot.lane.b32.xlu0 %v869, 32
    %v873 = vpop.permute.xlu0 %872
    %v875 = vmul.f32 %v868, %v873
    %877 = vrot.lane.b32.xlu0 %v875, 32
    %v878 = vpop.permute.xlu0 %877
    %v880 = vadd.f32 %v870, %v878
    %v881 = vtanh.pop %v880
    %883 = vrot.lane.b32.xlu0 %v881, 32
    %v884 = vpop.permute.xlu0 %883
    %v886 = vmul.f32 %v868, %v884
    %888 = vrot.lane.b32.xlu0 %v886, 64
    %v889 = vpop.permute.xlu0 %888
    %891 = vst.msk [vmem:[#allocation2 + $0x30] sm:$0xff] %vm43, %v889
    %v892 = vsel %vm43, %v889, 0
    %894 = vmatprep.subr.mxu0 0.0
    %895 = vmatpush1.msra.mxu0 %v173
    %896 = vmatprep.subr.mxu0 0.0
    %897 = vmatpush1.msra.mxu0 %v174
    %898 = vmatprep.subr.mxu0 0.0
    %899 = vmatpush1.msra.mxu0 %v175
    %900 = vmatprep.subr.mxu0 0.0
    %901 = vmatpush1.msra.mxu0 %v176
    %902 = vmatprep.subr.mxu0 0.0
    %903 = vmatpush1.msra.mxu0 0.0
    %904 = vmatprep.subr.mxu0 0.0
    %905 = vmatpush1.msra.mxu0 0.0
    %906 = vmatprep.subr.mxu0 0.0
    %907 = vmatpush1.msra.mxu0 0.0
    %908 = vmatprep.subr.mxu0 0.0
    %909 = vmatpush1.msra.mxu0 0.0
    %910 = vmatprep.subr.mxu0 0.0
    %911 = vmatpush1.msra.mxu0 0.0
    %912 = vmatprep.subr.mxu0 0.0
    %913 = vmatpush1.msra.mxu0 0.0
    %914 = vmatprep.subr.mxu0 0.0
    %915 = vmatpush1.msra.mxu0 0.0
    %916 = vmatprep.subr.mxu0 0.0
    %917 = vmatpush1.msra.mxu0 0.0
    %918 = vmatprep.subr.mxu0 0.0
    %919 = vmatpush1.msra.mxu0 0.0
    %920 = vmatprep.subr.mxu0 0.0
    %921 = vmatpush1.msra.mxu0 0.0
    %922 = vmatprep.subr.mxu0 0.0
    %923 = vmatpush1.msra.mxu0 0.0
    %924 = vmatprep.subr.mxu0 0.0
    %925 = vmatpush1.msra.mxu0 0.0
    %926 = vmatprep.subr.mxu0 0.0
    %927 = vmatpush1.msra.mxu0 0.0
    %928 = vmatprep.subr.mxu0 0.0
    %929 = vmatpush1.msra.mxu0 0.0
    %930 = vmatprep.subr.mxu0 0.0
    %931 = vmatpush1.msra.mxu0 0.0
    %932 = vmatprep.subr.mxu0 0.0
    %933 = vmatpush1.msra.mxu0 0.0
    %934 = vmatprep.subr.mxu0 0.0
    %935 = vmatpush1.msra.mxu0 0.0
    %936 = vmatprep.subr.mxu0 0.0
    %937 = vmatpush1.msra.mxu0 0.0
    %938 = vmatprep.subr.mxu0 0.0
    %939 = vmatpush1.msra.mxu0 0.0
    %940 = vmatprep.subr.mxu0 0.0
    %941 = vmatpush1.msra.mxu0 0.0
    %942 = vmatprep.subr.mxu0 0.0
    %943 = vmatpush1.msra.mxu0 0.0
    %944 = vmatprep.subr.mxu0 0.0
    %945 = vmatpush1.msra.mxu0 0.0
    %946 = vmatprep.subr.mxu0 0.0
    %947 = vmatpush1.msra.mxu0 0.0
    %948 = vmatprep.subr.mxu0 0.0
    %949 = vmatpush1.msra.mxu0 0.0
    %950 = vmatprep.subr.mxu0 0.0
    %951 = vmatpush1.msra.mxu0 0.0
    %952 = vmatprep.subr.mxu0 0.0
    %953 = vmatpush1.msra.mxu0 0.0
    %954 = vmatprep.subr.mxu0 0.0
    %955 = vmatpush1.msra.mxu0 0.0
    %956 = vmatprep.subr.mxu0 0.0
    %957 = vmatpush1.msra.mxu0 0.0
    %958 = vmatprep.mubr.f32.mxu0 0.0
    %959 = vmatmul.mubr.f32.gmra.mrb[0].mxu0 %v892
    %v960 = vpop.f32.mrb[0].mxu0
    %v961 = vadd.f32 0.0, %v960
    %v962 = vpop.f32.mrb[0].mxu0
    %963 = vdwg.mxu0
    %v964 = vadd.f32 %v170, %v961
    %v965 = vxor.u32 %v964, 2147483648
    %v966 = vmul.f32 %v965, 1.442695
    %v967 = vpow.pop %v966
    %v968 = vadd.f32 %v967, 1.0
    %v969 = vrcp.pop %v968
    %v970 = vmul.f32 1.0, %v969
    %v971 = vtanh.pop %v964
    %v972 = vmul.f32 %v970, %v880
    %974 = vrot.lane.b32.xlu0 %v971, 32
    %v975 = vpop.permute.xlu0 %974
    %v977 = vmul.f32 %v970, %v975
    %979 = vrot.lane.b32.xlu0 %v977, 32
    %v980 = vpop.permute.xlu0 %979
    %v982 = vadd.f32 %v972, %v980
    %v983 = vtanh.pop %v982
    %985 = vrot.lane.b32.xlu0 %v983, 32
    %v986 = vpop.permute.xlu0 %985
    %v988 = vmul.f32 %v970, %v986
    %990 = vrot.lane.b32.xlu0 %v988, 64
    %v991 = vpop.permute.xlu0 %990
    %993 = vst.msk [vmem:[#allocation2 + $0x38] sm:$0xff] %vm43, %v991
    %v994 = vld [vmem:[#allocation2] sm:$0xff]
    %v995 = vld [vmem:[#allocation2 + $0x8] sm:$0xff]
    %v996 = vld [vmem:[#allocation2 + $0x10] sm:$0xff]
    %v997 = vld [vmem:[#allocation2 + $0x18] sm:$0xff]
    %v998 = vld [vmem:[#allocation2 + $0x20] sm:$0xff]
    %v999 = vld [vmem:[#allocation2 + $0x28] sm:$0xff]
    %v1000 = vld [vmem:[#allocation2 + $0x30] sm:$0xff]
    %v1001 = vld [vmem:[#allocation2 + $0x38] sm:$0xff]
    %v1002 = vld [vmem:[%s4] sm:$0xff]
    %v1003 = vld [vmem:[%s4 + $0x8] sm:$0xff]
    %v1004 = vld [vmem:[%s4 + $0x10] sm:$0xff]
    %v1005 = vld [vmem:[%s4 + $0x18] sm:$0xff]
    %v1006 = vld [vmem:[%s5] sm:$0x1]
    %v1008 = vlaneseq
    %v1009 = vshrl.u32 %v1008, 7
    %v1010 = vsub.s32 0, %v1009
    %v1011 = vrot.slane %v1006, %v1010
    %v1014 = vsel %vm43, %v994, 0
    %v1017 = vsel %vm43, %v995, 0
    %v1020 = vsel %vm43, %v996, 0
    %v1023 = vsel %vm43, %v997, 0
    %v1026 = vsel %vm43, %v998, 0
    %v1029 = vsel %vm43, %v999, 0
    %v1032 = vsel %vm43, %v1000, 0
    %v1035 = vsel %vm43, %v1001, 0
    %1037 = vmatprep.subr.mxu0 0.0
    %1038 = vmatpush1.msra.mxu0 %v1002
    %1039 = vmatprep.subr.mxu0 0.0
    %1040 = vmatpush1.msra.mxu0 %v1003
    %1041 = vmatprep.subr.mxu0 0.0
    %1042 = vmatpush1.msra.mxu0 %v1004
    %1043 = vmatprep.subr.mxu0 0.0
    %1044 = vmatpush1.msra.mxu0 %v1005
    %1045 = vmatprep.subr.mxu0 0.0
    %1046 = vmatpush1.msra.mxu0 0.0
    %1047 = vmatprep.subr.mxu0 0.0
    %1048 = vmatpush1.msra.mxu0 0.0
    %1049 = vmatprep.subr.mxu0 0.0
    %1050 = vmatpush1.msra.mxu0 0.0
    %1051 = vmatprep.subr.mxu0 0.0
    %1052 = vmatpush1.msra.mxu0 0.0
    %1053 = vmatprep.subr.mxu0 0.0
    %1054 = vmatpush1.msra.mxu0 0.0
    %1055 = vmatprep.subr.mxu0 0.0
    %1056 = vmatpush1.msra.mxu0 0.0
    %1057 = vmatprep.subr.mxu0 0.0
    %1058 = vmatpush1.msra.mxu0 0.0
    %1059 = vmatprep.subr.mxu0 0.0
    %1060 = vmatpush1.msra.mxu0 0.0
    %1061 = vmatprep.subr.mxu0 0.0
    %1062 = vmatpush1.msra.mxu0 0.0
    %1063 = vmatprep.subr.mxu0 0.0
    %1064 = vmatpush1.msra.mxu0 0.0
    %1065 = vmatprep.subr.mxu0 0.0
    %1066 = vmatpush1.msra.mxu0 0.0
    %1067 = vmatprep.subr.mxu0 0.0
    %1068 = vmatpush1.msra.mxu0 0.0
    %1069 = vmatprep.subr.mxu0 0.0
    %1070 = vmatpush1.msra.mxu0 0.0
    %1071 = vmatprep.subr.mxu0 0.0
    %1072 = vmatpush1.msra.mxu0 0.0
    %1073 = vmatprep.subr.mxu0 0.0
    %1074 = vmatpush1.msra.mxu0 0.0
    %1075 = vmatprep.subr.mxu0 0.0
    %1076 = vmatpush1.msra.mxu0 0.0
    %1077 = vmatprep.subr.mxu0 0.0
    %1078 = vmatpush1.msra.mxu0 0.0
    %1079 = vmatprep.subr.mxu0 0.0
    %1080 = vmatpush1.msra.mxu0 0.0
    %1081 = vmatprep.subr.mxu0 0.0
    %1082 = vmatpush1.msra.mxu0 0.0
    %1083 = vmatprep.subr.mxu0 0.0
    %1084 = vmatpush1.msra.mxu0 0.0
    %1085 = vmatprep.subr.mxu0 0.0
    %1086 = vmatpush1.msra.mxu0 0.0
    %1087 = vmatprep.subr.mxu0 0.0
    %1088 = vmatpush1.msra.mxu0 0.0
    %1089 = vmatprep.subr.mxu0 0.0
    %1090 = vmatpush1.msra.mxu0 0.0
    %1091 = vmatprep.subr.mxu0 0.0
    %1092 = vmatpush1.msra.mxu0 0.0
    %1093 = vmatprep.subr.mxu0 0.0
    %1094 = vmatpush1.msra.mxu0 0.0
    %1095 = vmatprep.subr.mxu0 0.0
    %1096 = vmatpush1.msra.mxu0 0.0
    %1097 = vmatprep.subr.mxu0 0.0
    %1098 = vmatpush1.msra.mxu0 0.0
    %1099 = vmatprep.subr.mxu0 0.0
    %1100 = vmatpush1.msra.mxu0 0.0
    %1101 = vmatprep.mubr.f32.mxu0 0.0
    %1102 = vmatmul.mubr.f32.gmra.mrb[0].mxu0 %v1014
    %v1103 = vpop.f32.mrb[0].mxu0
    %v1104 = vadd.f32 %v1011, %v1103
    %v1105 = vpop.f32.mrb[0].mxu0
    %1106 = vmatprep.mubr.f32.mxu0 0.0
    %1107 = vmatmul.mubr.f32.gmra.mrb[0].mxu0 %v1017
    %v1108 = vpop.f32.mrb[0].mxu0
    %v1109 = vadd.f32 %v1011, %v1108
    %v1110 = vpop.f32.mrb[0].mxu0
    %1111 = vmatprep.mubr.f32.mxu0 0.0
    %1112 = vmatmul.mubr.f32.gmra.mrb[0].mxu0 %v1020
    %v1113 = vpop.f32.mrb[0].mxu0
    %v1114 = vadd.f32 %v1011, %v1113
    %v1115 = vpop.f32.mrb[0].mxu0
    %1116 = vmatprep.mubr.f32.mxu0 0.0
    %1117 = vmatmul.mubr.f32.gmra.mrb[0].mxu0 %v1023
    %v1118 = vpop.f32.mrb[0].mxu0
    %v1119 = vadd.f32 %v1011, %v1118
    %v1120 = vpop.f32.mrb[0].mxu0
    %1121 = vmatprep.mubr.f32.mxu0 0.0
    %1122 = vmatmul.mubr.f32.gmra.mrb[0].mxu0 %v1026
    %v1123 = vpop.f32.mrb[0].mxu0
    %v1124 = vadd.f32 %v1011, %v1123
    %v1125 = vpop.f32.mrb[0].mxu0
    %1126 = vmatprep.mubr.f32.mxu0 0.0
    %1127 = vmatmul.mubr.f32.gmra.mrb[0].mxu0 %v1029
    %v1128 = vpop.f32.mrb[0].mxu0
    %v1129 = vadd.f32 %v1011, %v1128
    %v1130 = vpop.f32.mrb[0].mxu0
    %1131 = vmatprep.mubr.f32.mxu0 0.0
    %1132 = vmatmul.mubr.f32.gmra.mrb[0].mxu0 %v1032
    %v1133 = vpop.f32.mrb[0].mxu0
    %v1134 = vadd.f32 %v1011, %v1133
    %v1135 = vpop.f32.mrb[0].mxu0
    %1136 = vmatprep.mubr.f32.mxu0 0.0
    %1137 = vmatmul.mubr.f32.gmra.mrb[0].mxu0 %v1035
    %v1138 = vpop.f32.mrb[0].mxu0
    %v1139 = vadd.f32 %v1011, %v1138
    %v1140 = vpop.f32.mrb[0].mxu0
    %1141 = vdwg.mxu0
    %1142 = vst [vmem:[#allocation3] sm:$0xff] %v1104
    %1143 = vst [vmem:[#allocation3 + $0x8] sm:$0xff] %v1109
    %1144 = vst [vmem:[#allocation3 + $0x10] sm:$0xff] %v1114
    %1145 = vst [vmem:[#allocation3 + $0x18] sm:$0xff] %v1119
    %1146 = vst [vmem:[#allocation3 + $0x20] sm:$0xff] %v1124
    %1147 = vst [vmem:[#allocation3 + $0x28] sm:$0xff] %v1129
    %1148 = vst [vmem:[#allocation3 + $0x30] sm:$0xff] %v1134
    %1149 = vst [vmem:[#allocation3 + $0x38] sm:$0xff] %v1139
    // Predicated region
    $region26: #{tpu_custom_call.1} parent=1 // pred_check
      _
    $region27: #{tpu_custom_call.1} parent=1 // pred_check_branch
      %1151 = sbr.rel (0) target = $region29
    $region28: #{tpu_custom_call.1} parent=1 // pred_region
      %s1153 = ssub.s32 1024, 1024
      %1154 = vsyncadd [#allocation4], %s1153
      %s1155 = sshll.u32 [#allocation3], 4
      %s1156 = int_to_ptr.vmem [resolvable:$true] %s1155
      %1161 = dma.vmem_to_hbm [thread:$0]  %s1156, 1024, %s6, [#allocation4], 128, 128, 8
    $region29: #{tpu_custom_call.1} parent=1 // pred_fallthru
      _
    // Predicated region
    $region30: #{tpu_custom_call.1} parent=1 // pred_check
      _
    $region31: #{tpu_custom_call.1} parent=1 // pred_check_branch
      %1163 = sbr.rel (0) target = $region33
    $region32: #{tpu_custom_call.1} parent=1 // pred_region
      %1164 = dma.done [#allocation4], 1024
    $region33: #{tpu_custom_call.1} parent=1 // pred_fallthru
      _
    %1165 = vsyncpa [#allocation4], 1

</llo_original>
